<compile_context>
chip_gen: v7x
topology: tpu7x:2x2x1
jax: 0.10.0
libtpu: 0.0.40
codegen_flags: <defaults>
</compile_context>

<pallas_src>
import math

import jax
import jax.numpy as jnp
from jax.experimental import pallas as pl
from jax.experimental.pallas import tpu as pltpu

D_IN = 2    # torch.nn.Linear(2, 3) in_features
D_OUT = 3   # out_features


def _round_up(x, m):
    return ((x + m - 1) // m) * m


def _cdiv(a, b):
    return (a + b - 1) // b


def _permute_pow_linear_kernel(ws_ref, x_ref, o_ref):
    # ws_ref: SMEM (D_OUT*D_IN,) f32  -- sqrt(2)*W, row-major (o, i)
    # x_ref : VMEM (bb, D_IN, ts)     -- original (B, D_in, S) layout, lane axis = S
    # o_ref : VMEM (D_OUT, bb, ts)    -- lane-dense output
    d_in = x_ref.shape[1]
    d_out = o_ref.shape[0]
    # Slice each input channel to a dense (bb, ts) tile and square in f32
    # (explicit f32 so a bf16 input path would not square in low precision).
    sq = [x_ref[:, i, :].astype(jnp.float32) ** 2 for i in range(d_in)]
    for o in range(d_out):
        acc = ws_ref[o * d_in + 0] * sq[0]
        for i in range(1, d_in):
            acc = acc + ws_ref[o * d_in + i] * sq[i]
        o_ref[o] = acc.astype(o_ref.dtype)


def permute_pow_linear(x, weight, *, bb_target=128, ts_target=2048):
    """x: (B, D_in, S) f32, weight: (D_out, D_in) f32 -> (B, S, D_out)."""
    B, d_in, S = x.shape
    d_out = weight.shape[0]

    # Block sizing: lane axis (S) in 128-multiples up to 2048, batch rows up to 128.
    # Full-size block = 2 MiB in + 3 MiB out HBM traffic per step; VMEM footprint
    # (input sublane-padded 2->8, double-buffered) ~22 MiB, within v7x's budget.
    ts = min(ts_target, _round_up(S, 128))
    bb = min(bb_target, _round_up(B, 8))
    gb, gs = _cdiv(B, bb), _cdiv(S, ts)
    # v7x has 2 TensorCores per chip: ensure >=2 grid programs when the problem allows.
    if gb * gs < 2 and ts > 128:
        ts = _round_up(_cdiv(S, 2), 128)
        gs = _cdiv(S, ts)
    grid = (gb, gs)

    # sqrt(2) folded into the weights, passed as SMEM scalars (scalar prefetch).
    # TODO(synk): torch.sqrt(2) on a Python int raises TypeError in PyTorch;
    # interpreted here as the scalar sqrt(2).
    ws = (jnp.float32(math.sqrt(2.0)) * weight.astype(jnp.float32)).reshape(-1)

    out = pl.pallas_call(
        _permute_pow_linear_kernel,
        out_shape=jax.ShapeDtypeStruct((d_out, B, S), x.dtype),
        grid_spec=pltpu.PrefetchScalarGridSpec(
            num_scalar_prefetch=1,
            grid=grid,
            in_specs=[
                # (bb, D_in, ts): D_in == full dim, ts % 128 == 0 -> legal tile.
                # Ragged edge blocks (B % bb, S % ts) are masked by Pallas.
                pl.BlockSpec((bb, d_in, ts), lambda bi, si, ws_s: (bi, 0, si)),
            ],
            out_specs=pl.BlockSpec((d_out, bb, ts), lambda bi, si, ws_s: (0, bi, si)),
        ),
        compiler_params=pltpu.CompilerParams(
            dimension_semantics=("parallel", "parallel"),
            vmem_limit_bytes=48 * 1024 * 1024,
        ),
    )(ws, x)

    # Lane-dense (D_out, B, S) kernel output -> module's (B, S, D_out) layout.
    # This is one extra (small) XLA pass over the 3*B*S output; drop it if a
    # downstream consumer can take (D_out, B, S) directly.
    return jnp.transpose(out, (1, 2, 0))


def reference(x, weight):
    v1 = jnp.transpose(x, (0, 2, 1)) ** 2
    v2 = jnp.einsum("bsd,od->bso", v1, weight)
    return jnp.float32(math.sqrt(2.0)) * v2


if __name__ == "__main__":
    key = jax.random.PRNGKey(0)
    kx0, kx1, kx2, kw = jax.random.split(key, 4)

    # PyTorch-style uniform(-1/sqrt(in), 1/sqrt(in)) Linear(2, 3) weight (bias unused).
    bound = 1.0 / math.sqrt(D_IN)
    weight = jax.random.uniform(
        kw, (D_OUT, D_IN), dtype=jnp.float32, minval=-bound, maxval=bound
    )

    cases = [
        (1, 2),     # the module's own example input shape: randn(1, 2, 2)
        (2, 8),     # small multi-batch case
        (9, 200),   # ragged batch block + 2-step lane grid
    ]
    for (b, s), k in zip(cases, [kx0, kx1, kx2]):
        x = jax.random.normal(k, (b, D_IN, s), dtype=jnp.float32)
        out = jax.block_until_ready(permute_pow_linear(x, weight))
        ref = reference(x, weight)
        assert out.shape == (b, s, D_OUT), f"bad shape for B={b}, S={s}"
        assert jnp.allclose(out, ref, atol=1e-5, rtol=1e-5), (
            f"mismatch vs reference for B={b}, S={s}"
        )

    print("KERNEL_OK")
</pallas_src>

<mosaic_0001>
module attributes {stable_mosaic.version = 11 : i64} {
  func.func @_permute_pow_linear_kernel(%arg0: i32, %arg1: i32, %arg2: memref<6xf32, #tpu.memory_space<smem>>, %arg3: memref<8x2x128xf32, #tpu.memory_space<vmem>>, %arg4: memref<3x8x128xf32, #tpu.memory_space<vmem>>) attributes {dimension_semantics = [#tpu.dimension_semantics<parallel>, #tpu.dimension_semantics<parallel>], iteration_bounds = array<i64: 1, 1>, scalar_prefetch = 1 : i64, scratch_operands = 0 : i64, tpu.core_type = #tpu.core_type<tc>, window_params = [{transform_indices = @transform_0, window_bounds = array<i64: 8, 2, 128>}, {transform_indices = @transform_1, window_bounds = array<i64: 3, 8, 128>}]} {
    %c0 = arith.constant 0 : index
    %c0_0 = arith.constant 0 : index
    %c0_1 = arith.constant 0 : index
    %0 = vector.load %arg3[%c0, %c0_0, %c0_1] : memref<8x2x128xf32, #tpu.memory_space<vmem>>, vector<8x1x128xf32>
    %1 = vector.shape_cast %0 : vector<8x1x128xf32> to vector<8x128xf32>
    %2 = arith.mulf %1, %1 : vector<8x128xf32>
    %c0_2 = arith.constant 0 : index
    %c1 = arith.constant 1 : index
    %c0_3 = arith.constant 0 : index
    %3 = vector.load %arg3[%c0_2, %c1, %c0_3] : memref<8x2x128xf32, #tpu.memory_space<vmem>>, vector<8x1x128xf32>
    %4 = vector.shape_cast %3 : vector<8x1x128xf32> to vector<8x128xf32>
    %5 = arith.mulf %4, %4 : vector<8x128xf32>
    %c0_4 = arith.constant 0 : index
    %6 = memref.load %arg2[%c0_4] : memref<6xf32, #tpu.memory_space<smem>>
    %7 = vector.broadcast %6 : f32 to vector<8x128xf32>
    %8 = arith.mulf %7, %2 : vector<8x128xf32>
    %c1_5 = arith.constant 1 : index
    %9 = memref.load %arg2[%c1_5] : memref<6xf32, #tpu.memory_space<smem>>
    %10 = vector.broadcast %9 : f32 to vector<8x128xf32>
    %11 = arith.mulf %10, %5 : vector<8x128xf32>
    %12 = arith.addf %8, %11 : vector<8x128xf32>
    %c0_6 = arith.constant 0 : index
    %c0_7 = arith.constant 0 : index
    %c0_8 = arith.constant 0 : index
    %13 = vector.load %arg4[%c0_6, %c0_7, %c0_8] : memref<3x8x128xf32, #tpu.memory_space<vmem>>, vector<1x8x128xf32>
    %14 = vector.shape_cast %13 : vector<1x8x128xf32> to vector<8x128xf32>
    %15 = vector.shape_cast %12 : vector<8x128xf32> to vector<1x8x128xf32>
    tpu.vector_store %arg4[%c0_6, %c0_7, %c0_8], %15 {strides = array<i32>} : memref<3x8x128xf32, #tpu.memory_space<vmem>>, vector<1x8x128xf32>,
    %c2 = arith.constant 2 : index
    %16 = memref.load %arg2[%c2] : memref<6xf32, #tpu.memory_space<smem>>
    %17 = vector.broadcast %16 : f32 to vector<8x128xf32>
    %18 = arith.mulf %17, %2 : vector<8x128xf32>
    %c3 = arith.constant 3 : index
    %19 = memref.load %arg2[%c3] : memref<6xf32, #tpu.memory_space<smem>>
    %20 = vector.broadcast %19 : f32 to vector<8x128xf32>
    %21 = arith.mulf %20, %5 : vector<8x128xf32>
    %22 = arith.addf %18, %21 : vector<8x128xf32>
    %c1_9 = arith.constant 1 : index
    %c0_10 = arith.constant 0 : index
    %c0_11 = arith.constant 0 : index
    %23 = vector.load %arg4[%c1_9, %c0_10, %c0_11] : memref<3x8x128xf32, #tpu.memory_space<vmem>>, vector<1x8x128xf32>
    %24 = vector.shape_cast %23 : vector<1x8x128xf32> to vector<8x128xf32>
    %25 = vector.shape_cast %22 : vector<8x128xf32> to vector<1x8x128xf32>
    tpu.vector_store %arg4[%c1_9, %c0_10, %c0_11], %25 {strides = array<i32>} : memref<3x8x128xf32, #tpu.memory_space<vmem>>, vector<1x8x128xf32>,
    %c4 = arith.constant 4 : index
    %26 = memref.load %arg2[%c4] : memref<6xf32, #tpu.memory_space<smem>>
    %27 = vector.broadcast %26 : f32 to vector<8x128xf32>
    %28 = arith.mulf %27, %2 : vector<8x128xf32>
    %c5 = arith.constant 5 : index
    %29 = memref.load %arg2[%c5] : memref<6xf32, #tpu.memory_space<smem>>
    %30 = vector.broadcast %29 : f32 to vector<8x128xf32>
    %31 = arith.mulf %30, %5 : vector<8x128xf32>
    %32 = arith.addf %28, %31 : vector<8x128xf32>
    %c2_12 = arith.constant 2 : index
    %c0_13 = arith.constant 0 : index
    %c0_14 = arith.constant 0 : index
    %33 = vector.load %arg4[%c2_12, %c0_13, %c0_14] : memref<3x8x128xf32, #tpu.memory_space<vmem>>, vector<1x8x128xf32>
    %34 = vector.shape_cast %33 : vector<1x8x128xf32> to vector<8x128xf32>
    %35 = vector.shape_cast %32 : vector<8x128xf32> to vector<1x8x128xf32>
    tpu.vector_store %arg4[%c2_12, %c0_13, %c0_14], %35 {strides = array<i32>} : memref<3x8x128xf32, #tpu.memory_space<vmem>>, vector<1x8x128xf32>,
    return
  }
  func.func @transform_0(%arg0: i32, %arg1: i32, %arg2: memref<6xf32, #tpu.memory_space<smem>>) -> (i32, i32, i32) {
    %c0_i32 = arith.constant 0 : i32
    %c0_i32_0 = arith.constant 0 : i32
    return %arg0, %c0_i32, %arg1 : i32, i32, i32
  }
  func.func @transform_1(%arg0: i32, %arg1: i32, %arg2: memref<6xf32, #tpu.memory_space<smem>>) -> (i32, i32, i32) {
    %c0_i32 = arith.constant 0 : i32
    %c0_i32_0 = arith.constant 0 : i32
    return %c0_i32, %arg0, %arg1 : i32, i32, i32
  }
}

</mosaic_0001>

<llo_original>
// kernel: tpu_custom_call.1
$region0: #{tpu_custom_call.1}
  #allocation0 [shape = 'u32[]', space=smem, size = 0x4, offset = 0x4, fixed_abs, tag = 'smem constant byte address 0x4 - core index']
  #allocation1 [shape = 'u32[144,128]{1,0:T(1,128)}', space=vmem, size = 0x12000, scoped, tag = 'internal scratch']
  #allocation2 [shape = 's32[1]{0}', space=sflag, size = 0x4, scoped, tag = 'scoped memory for tpu_custom_call.1']
  #allocation3 [shape = 'u8[512]{0}', space=smem, size = 0x200, scoped, tag = 'prefetched SMEM operand 0']
  %s0 = inlined_call_operand.hbm [shape: f32[6], index: 0, kind: input, shape index: {}]
  %s1 = inlined_call_operand.vmem [shape: f32[1,2,2], index: 1, kind: input, shape index: {}]
  %s2 = inlined_call_operand.vmem [shape: f32[3,1,2], index: 2, kind: output, shape index: {}]
  %s3 = sld [smem:[#allocation0]]
  $region44: #{tpu_custom_call.1} parent=0
    _
  %s5 = ssub.s32 1, %s3
  %s6 = scalar_select 0, %s5, %s3
  %8 = dma.hbm_to_smem %s0, 16, [#allocation3], [#allocation2]
  %9 = dma.done [#allocation2], 16
  %10 = sfence
  $region1: #{tpu_custom_call.1} parent=0
    #allocation4 [shape = 'u8[12288]{0}', space=vmem, size = 0x3000, scoped, tag = 'output window, operand 0, single buffered']
    // Predicated region
    $region2: #{tpu_custom_call.1} parent=1 // pred_check
      _
    $region3: #{tpu_custom_call.1} parent=1 // pred_check_branch
      %12 = sbr.rel (0) target = $region5
    $region4: #{tpu_custom_call.1} parent=1 // pred_region
      _
    $region5: #{tpu_custom_call.1} parent=1 // pred_fallthru
      _
    %v13 = vld [vmem:[%s1] sm:$0x1]
    %v14 = vld [vmem:[%s1 + $0x2] sm:$0x1]
    %v15 = vld [vmem:[%s1 + $0x4] sm:$0x1]
    %v16 = vld [vmem:[%s1 + $0x6] sm:$0x1]
    %v17 = vld [vmem:[%s1 + $0x8] sm:$0x1]
    %v18 = vld [vmem:[%s1 + $0xa] sm:$0x1]
    %v19 = vld [vmem:[%s1 + $0xc] sm:$0x1]
    %v20 = vld [vmem:[%s1 + $0xe] sm:$0x1]
    %v21 = vmul.f32 %v13, %v13
    %v22 = vmul.f32 %v14, %v14
    %v23 = vmul.f32 %v15, %v15
    %v24 = vmul.f32 %v16, %v16
    %v25 = vmul.f32 %v17, %v17
    %v26 = vmul.f32 %v18, %v18
    %v27 = vmul.f32 %v19, %v19
    %v28 = vmul.f32 %v20, %v20
    %v29 = vld [vmem:[%s1 + $0x1] sm:$0x1]
    %v30 = vld [vmem:[%s1 + $0x3] sm:$0x1]
    %v31 = vld [vmem:[%s1 + $0x5] sm:$0x1]
    %v32 = vld [vmem:[%s1 + $0x7] sm:$0x1]
    %v33 = vld [vmem:[%s1 + $0x9] sm:$0x1]
    %v34 = vld [vmem:[%s1 + $0xb] sm:$0x1]
    %v35 = vld [vmem:[%s1 + $0xd] sm:$0x1]
    %v36 = vld [vmem:[%s1 + $0xf] sm:$0x1]
    %v37 = vmul.f32 %v29, %v29
    %v38 = vmul.f32 %v30, %v30
    %v39 = vmul.f32 %v31, %v31
    %v40 = vmul.f32 %v32, %v32
    %v41 = vmul.f32 %v33, %v33
    %v42 = vmul.f32 %v34, %v34
    %v43 = vmul.f32 %v35, %v35
    %v44 = vmul.f32 %v36, %v36
    %s45 = sld [smem:[#allocation3]]
    %v46 = vstv %s45
    %v47 = vmul.f32 %v46, %v21
    %v48 = vmul.f32 %v46, %v22
    %v49 = vmul.f32 %v46, %v23
    %v50 = vmul.f32 %v46, %v24
    %v51 = vmul.f32 %v46, %v25
    %v52 = vmul.f32 %v46, %v26
    %v53 = vmul.f32 %v46, %v27
    %v54 = vmul.f32 %v46, %v28
    %s55 = sld [smem:[#allocation3 + $0x1]]
    %v56 = vstv %s55
    %v57 = vmul.f32 %v56, %v37
    %v58 = vmul.f32 %v56, %v38
    %v59 = vmul.f32 %v56, %v39
    %v60 = vmul.f32 %v56, %v40
    %v61 = vmul.f32 %v56, %v41
    %v62 = vmul.f32 %v56, %v42
    %v63 = vmul.f32 %v56, %v43
    %v64 = vmul.f32 %v56, %v44
    %v65 = vadd.f32 %v47, %v57
    %v66 = vadd.f32 %v48, %v58
    %v67 = vadd.f32 %v49, %v59
    %v68 = vadd.f32 %v50, %v60
    %v69 = vadd.f32 %v51, %v61
    %v70 = vadd.f32 %v52, %v62
    %v71 = vadd.f32 %v53, %v63
    %v72 = vadd.f32 %v54, %v64
    %v81 = vrot.slane %v66, 7
    %vm82 = vcmask 1041409
    %v83 = vsel %vm82, %v81, %v65
    %v84 = vrot.slane %v67, 6
    %vm85 = vcmask 1042434
    %v86 = vsel %vm85, %v84, %v83
    %v87 = vrot.slane %v68, 5
    %vm88 = vcmask 1043459
    %v89 = vsel %vm88, %v87, %v86
    %v90 = vrot.slane %v69, 4
    %vm91 = vcmask 1044484
    %v92 = vsel %vm91, %v90, %v89
    %v93 = vrot.slane %v70, 3
    %vm94 = vcmask 1045509
    %v95 = vsel %vm94, %v93, %v92
    %v96 = vrot.slane %v71, 2
    %vm97 = vcmask 1046534
    %v98 = vsel %vm97, %v96, %v95
    %v99 = vrot.slane %v72, 1
    %vm100 = vcmask 1047559
    %v101 = vsel %vm100, %v99, %v98
    %103 = vst [vmem:[#allocation4] sm:$0xff] %v101
    %s104 = sld [smem:[#allocation3 + $0x2]]
    %v105 = vstv %s104
    %v106 = vmul.f32 %v105, %v21
    %v107 = vmul.f32 %v105, %v22
    %v108 = vmul.f32 %v105, %v23
    %v109 = vmul.f32 %v105, %v24
    %v110 = vmul.f32 %v105, %v25
    %v111 = vmul.f32 %v105, %v26
    %v112 = vmul.f32 %v105, %v27
    %v113 = vmul.f32 %v105, %v28
    %s114 = sld [smem:[#allocation3 + $0x3]]
    %v115 = vstv %s114
    %v116 = vmul.f32 %v115, %v37
    %v117 = vmul.f32 %v115, %v38
    %v118 = vmul.f32 %v115, %v39
    %v119 = vmul.f32 %v115, %v40
    %v120 = vmul.f32 %v115, %v41
    %v121 = vmul.f32 %v115, %v42
    %v122 = vmul.f32 %v115, %v43
    %v123 = vmul.f32 %v115, %v44
    %v124 = vadd.f32 %v106, %v116
    %v125 = vadd.f32 %v107, %v117
    %v126 = vadd.f32 %v108, %v118
    %v127 = vadd.f32 %v109, %v119
    %v128 = vadd.f32 %v110, %v120
    %v129 = vadd.f32 %v111, %v121
    %v130 = vadd.f32 %v112, %v122
    %v131 = vadd.f32 %v113, %v123
    %v140 = vrot.slane %v125, 7
    %v141 = vsel %vm82, %v140, %v124
    %v142 = vrot.slane %v126, 6
    %v143 = vsel %vm85, %v142, %v141
    %v144 = vrot.slane %v127, 5
    %v145 = vsel %vm88, %v144, %v143
    %v146 = vrot.slane %v128, 4
    %v147 = vsel %vm91, %v146, %v145
    %v148 = vrot.slane %v129, 3
    %v149 = vsel %vm94, %v148, %v147
    %v150 = vrot.slane %v130, 2
    %v151 = vsel %vm97, %v150, %v149
    %v152 = vrot.slane %v131, 1
    %v153 = vsel %vm100, %v152, %v151
    %s155 = scalar_lea.vmem [#allocation4], 8
    %156 = vst [vmem:[%s155] sm:$0xff] %v153
    %s157 = sld [smem:[#allocation3 + $0x4]]
    %v158 = vstv %s157
    %v159 = vmul.f32 %v158, %v21
    %v160 = vmul.f32 %v158, %v22
    %v161 = vmul.f32 %v158, %v23
    %v162 = vmul.f32 %v158, %v24
    %v163 = vmul.f32 %v158, %v25
    %v164 = vmul.f32 %v158, %v26
    %v165 = vmul.f32 %v158, %v27
    %v166 = vmul.f32 %v158, %v28
    %s167 = sld [smem:[#allocation3 + $0x5]]
    %v168 = vstv %s167
    %v169 = vmul.f32 %v168, %v37
    %v170 = vmul.f32 %v168, %v38
    %v171 = vmul.f32 %v168, %v39
    %v172 = vmul.f32 %v168, %v40
    %v173 = vmul.f32 %v168, %v41
    %v174 = vmul.f32 %v168, %v42
    %v175 = vmul.f32 %v168, %v43
    %v176 = vmul.f32 %v168, %v44
    %v177 = vadd.f32 %v159, %v169
    %v178 = vadd.f32 %v160, %v170
    %v179 = vadd.f32 %v161, %v171
    %v180 = vadd.f32 %v162, %v172
    %v181 = vadd.f32 %v163, %v173
    %v182 = vadd.f32 %v164, %v174
    %v183 = vadd.f32 %v165, %v175
    %v184 = vadd.f32 %v166, %v176
    %v193 = vrot.slane %v178, 7
    %v194 = vsel %vm82, %v193, %v177
    %v195 = vrot.slane %v179, 6
    %v196 = vsel %vm85, %v195, %v194
    %v197 = vrot.slane %v180, 5
    %v198 = vsel %vm88, %v197, %v196
    %v199 = vrot.slane %v181, 4
    %v200 = vsel %vm91, %v199, %v198
    %v201 = vrot.slane %v182, 3
    %v202 = vsel %vm94, %v201, %v200
    %v203 = vrot.slane %v183, 2
    %v204 = vsel %vm97, %v203, %v202
    %v205 = vrot.slane %v184, 1
    %v206 = vsel %vm100, %v205, %v204
    %s208 = scalar_lea.vmem [#allocation4], 16
    %209 = vst [vmem:[%s208] sm:$0xff] %v206
    // Predicated region
    $region6: #{tpu_custom_call.1} parent=1 // pred_check
      _
    $region7: #{tpu_custom_call.1} parent=1 // pred_check_branch
      %211 = sbr.rel (0) target = $region9
    $region8: #{tpu_custom_call.1} parent=1 // pred_region
      // Predicated region
      $region10: #{tpu_custom_call.1} parent=8 // pred_check
        _
      $region11: #{tpu_custom_call.1} parent=8 // pred_check_branch
        %213 = sbr.rel (0) target = $region13
      $region12: #{tpu_custom_call.1} parent=8 // pred_region
        // Predicated region
        $region14: #{tpu_custom_call.1} parent=12 // pred_check
          _
        $region15: #{tpu_custom_call.1} parent=12 // pred_check_branch
          %215 = sbr.rel target = $region17
        $region16: #{tpu_custom_call.1} parent=12 // pred_region
          // Predicated region
          $region29: #{tpu_custom_call.1} parent=16 // pred_check
            _
          $region30: #{tpu_custom_call.1} parent=16 // pred_check_branch
            %234 = sbr.rel (0) target = $region32
          $region31: #{tpu_custom_call.1} parent=16 // pred_region
            loop: start=0, step=1, limit=1
            $region33: #{tpu_custom_call.1} parent=31 // loop_pre_header
              _
            $region34: #{tpu_custom_call.1} parent=31 // loop_header
              %s237 = sphi 0, %s241
              %p238 = scmp.ge.s32.totalorder %s237, 1
              %s242 = sphi [#allocation4], [#allocation4]
              %s243 = sphi %s2, %s2
            $region35: #{tpu_custom_call.1} parent=31 // loop_header_branch
              %240 = sbr.rel (%p238) target = $region39
            $region36: #{tpu_custom_call.1} parent=31 // loop_body
              %v244 = vld [vmem:[%s242] sm:$0x1]
              %245 = vst [vmem:[%s243] sm:$0x1] %v244
              %v246 = vld [vmem:[%s242 + $0x8] sm:$0x1]
              %247 = vst [vmem:[%s243 + $0x1] sm:$0x1] %v246
              %v248 = vld [vmem:[%s242 + $0x10] sm:$0x1]
              %249 = vst [vmem:[%s243 + $0x2] sm:$0x1] %v248
            $region37: #{tpu_custom_call.1} parent=31 // loop_footer
              %s241 = sadd.s32 1, %s237
            $region38: #{tpu_custom_call.1} parent=31 // loop_footer_branch
              %236 = sbr.rel target = $region34
            $region39: #{tpu_custom_call.1} parent=31 // loop_exit
              _
          $region32: #{tpu_custom_call.1} parent=16 // pred_fallthru
            _
        $region17: #{tpu_custom_call.1} parent=12 // pred_fallthru
          _
        // Predicated region
        $region18: #{tpu_custom_call.1} parent=12 // pred_check
          _
        $region19: #{tpu_custom_call.1} parent=12 // pred_check_branch
          %217 = sbr.rel (0) target = $region21
        $region20: #{tpu_custom_call.1} parent=12 // pred_region
          loop: start=0, step=1, limit=1
          $region22: #{tpu_custom_call.1} parent=20 // loop_pre_header
            _
          $region23: #{tpu_custom_call.1} parent=20 // loop_header
            %s220 = sphi 0, %s224
            %p221 = scmp.ge.s32.totalorder %s220, 1
            %s225 = sphi [#allocation4], [#allocation4]
            %s226 = sphi %s2, %s2
          $region24: #{tpu_custom_call.1} parent=20 // loop_header_branch
            %223 = sbr.rel (%p221) target = $region28
          $region25: #{tpu_custom_call.1} parent=20 // loop_body
            %v227 = vld [vmem:[%s225] sm:$0x1]
            %228 = vst [vmem:[%s226] sm:$0x1] %v227
            %v229 = vld [vmem:[%s225 + $0x8] sm:$0x1]
            %230 = vst [vmem:[%s226 + $0x1] sm:$0x1] %v229
            %v231 = vld [vmem:[%s225 + $0x10] sm:$0x1]
            %232 = vst [vmem:[%s226 + $0x2] sm:$0x1] %v231
          $region26: #{tpu_custom_call.1} parent=20 // loop_footer
            %s224 = sadd.s32 1, %s220
          $region27: #{tpu_custom_call.1} parent=20 // loop_footer_branch
            %219 = sbr.rel target = $region23
          $region28: #{tpu_custom_call.1} parent=20 // loop_exit
            _
        $region21: #{tpu_custom_call.1} parent=12 // pred_fallthru
          _
      $region13: #{tpu_custom_call.1} parent=8 // pred_fallthru
        _
      %250 = vnop
    $region9: #{tpu_custom_call.1} parent=1 // pred_fallthru
      _
    // Predicated region
    $region40: #{tpu_custom_call.1} parent=1 // pred_check
      _
    $region41: #{tpu_custom_call.1} parent=1 // pred_check_branch
      %252 = sbr.rel (0) target = $region43
    $region42: #{tpu_custom_call.1} parent=1 // pred_region
      _
    $region43: #{tpu_custom_call.1} parent=1 // pred_fallthru
      _

</llo_original>
